<compile_context>
chip_gen: v5e
topology: v5e:2x2
jax: 0.10.0
libtpu: 0.0.40
codegen_flags: <defaults>
</compile_context>

<pallas_src>
import functools

import jax
import jax.numpy as jnp
from jax.experimental import pallas as pl
from jax.experimental.pallas import tpu as pltpu


def _block_kernel(x_ref, ln1_w_ref, ln1_b_ref, wqkv_ref, wo_ref, bo_ref,
                  ln2_w_ref, ln2_b_ref, w1_ref, b1_ref, w2_ref, b2_ref,
                  o_ref, *, n_head: int, bt: int, seq_len: int, eps: float = 1e-5):
    f32, bf16 = jnp.float32, jnp.bfloat16
    T = seq_len
    x = x_ref[...].astype(f32)                       # (M, C) slab, M = bt * T rows
    M, C = x.shape
    hs = C // n_head
    # NOTE: bigram.py scales attention scores by n_embed (C) ** -0.5, not head_size.
    scale = float(C) ** -0.5

    def layernorm(z, w_ref, b_ref):                  # f32 statistics
        mu = jnp.mean(z, axis=-1, keepdims=True)
        var = jnp.mean(jnp.square(z - mu), axis=-1, keepdims=True)
        return (z - mu) * jax.lax.rsqrt(var + eps) * w_ref[0] + b_ref[0]

    # ---------------- LayerNorm 1 ----------------
    xn = layernorm(x, ln1_w_ref, ln1_b_ref)                                # (M, C) f32

    # -------- fused QKV projection: one (M, C) @ (C, 3C) MXU matmul --------
    qkv = jnp.dot(xn.astype(bf16), wqkv_ref[...],
                  preferred_element_type=f32)                              # (M, 3C) f32
    # Fold the attention scale into q (f32) before the bf16 cast.
    q3 = (qkv[:, :C] * scale).astype(bf16).reshape(bt, T, C)               # (bt, T, C)
    k3 = qkv[:, C:2 * C].astype(bf16).reshape(bt, T, C)
    v3 = qkv[:, 2 * C:3 * C].astype(bf16).reshape(bt, T, C)

    # Causal mask as an additive bias, computed once per grid step (shared by heads).
    row = jax.lax.broadcasted_iota(jnp.int32, (T, T), 0)
    col = jax.lax.broadcasted_iota(jnp.int32, (T, T), 1)
    mask_bias = jnp.where(col <= row, 0.0, -1e30).astype(f32)              # (T, T)

    # -------- attention core: batched over the batch tile, small static head loop -----
    head_outs = []
    for h in range(n_head):                          # static, n_head is small (4..12)
        sl = slice(h * hs, (h + 1) * hs)
        qh, kh, vh = q3[..., sl], k3[..., sl], v3[..., sl]                 # (bt, T, hs)
        s = jnp.einsum('btd,bsd->bts', qh, kh,
                       preferred_element_type=f32)                         # (bt, T, T)
        s = s + mask_bias[None]
        s = s - jnp.max(s, axis=-1, keepdims=True)
        p = jnp.exp(s)
        denom = jnp.sum(p, axis=-1, keepdims=True)
        wei = p * pl.reciprocal(denom, approx=True)  # softmax normalize on the EUP
        # attention dropout: identity in eval mode
        head_outs.append(jnp.einsum('bts,bsd->btd', wei.astype(bf16), vh,
                                    preferred_element_type=f32))           # (bt, T, hs)

    # -------- output projection: concat heads (lane axis) + ONE (M,C)@(C,C) matmul -----
    att = jnp.concatenate(head_outs, axis=-1).reshape(M, C).astype(bf16)   # (M, C) bf16
    sa = jnp.dot(att, wo_ref[...], preferred_element_type=f32) + bo_ref[0]
    # proj dropout: identity in eval mode
    x1 = x + sa                                                            # residual 1

    # ---------------- LayerNorm 2 + FeedForward ----------------
    xn2 = layernorm(x1, ln2_w_ref, ln2_b_ref)
    hid = jnp.dot(xn2.astype(bf16), w1_ref[...],
                  preferred_element_type=f32) + b1_ref[0]                  # (M, 4C)
    hid = jnp.maximum(hid, 0.0)                                            # ReLU
    ff = jnp.dot(hid.astype(bf16), w2_ref[...],
                 preferred_element_type=f32) + b2_ref[0]                   # (M, C)
    # ffwd dropout: identity in eval mode

    o_ref[...] = (x1 + ff).astype(o_ref.dtype)                             # residual 2


def _tpu_vmem_bytes():
    """Per-core VMEM capacity; conservative 64 MiB (v7x-class) fallback."""
    try:
        return int(pltpu.get_tpu_info().vmem_capacity_bytes)
    except Exception:
        return 64 << 20


def _step_footprint_bytes(bt, T, C, H, n_head):
    """Honest single-count estimate of one grid step's VMEM footprint after the
    resident-weight / no-scratch restructuring."""
    del n_head
    M = bt * T
    f32b, bf16b = 4, 2
    # Single-buffered resident weights (bf16) + small f32 params.
    weights = bf16b * (3 * C * C + C * C + C * H + H * C) + f32b * (6 * C + H)
    # Double-buffered f32 x / out tiles (the only pipelined operands).
    io = 2 * 2 * f32b * M * C
    # In-flight activations (generous): residual stream, qkv, q/k/v copies, hid, scores.
    acts = (f32b * (10 * M * C + 2 * M * H + 4 * bt * T * T)
            + bf16b * (5 * M * C + M * H))
    return weights + io + acts


def _choose_batch_tile(B, T, C, n_head, vmem_cap):
    """Fold batch into the matmul M dimension.  Target M ~= 1024 rows on 128 MiB-class
    parts (v5e/v6e), ~512 on 64 MiB-class (v7x); shrink until the step footprint fits,
    and on v7x prefer >= 2 grid steps (2 TensorCores) when M stays >= 256 rows."""
    H = 4 * C
    big_vmem = vmem_cap >= (96 << 20)
    target_m = 1024 if big_vmem else 512
    bt = max(1, min(B, max(1, target_m // max(T, 1))))
    while B % bt:
        bt -= 1
    budget = int(0.7 * vmem_cap)
    while bt > 1 and _step_footprint_bytes(bt, T, C, H, n_head) > budget:
        bt -= 1
        while bt > 1 and B % bt:
            bt -= 1
    if (not big_vmem) and B // bt < 2:
        half = bt // 2
        while half > 1 and B % half:
            half -= 1
        if half >= 1 and B % half == 0 and half * T >= 256:
            bt = half
    return bt


def _vmem_limit_bytes(bt, T, C, H, n_head, vmem_cap):
    est = _step_footprint_bytes(bt, T, C, H, n_head) + (4 << 20)
    hi = max(32 << 20, int(0.9 * vmem_cap))
    return int(min(max(est, 32 << 20), hi))


def transformer_block(x, params, n_head, *, batch_tile=None):
    """x: (B, T, C) float32. params: dict of weights (see init_params)."""
    B, T, C = x.shape
    assert C % n_head == 0
    H = 4 * C

    vmem_cap = _tpu_vmem_bytes()
    bt = batch_tile if batch_tile is not None else _choose_batch_tile(B, T, C, n_head, vmem_cap)
    assert B % bt == 0
    M = bt * T

    bf16 = jnp.bfloat16
    # Fused QKV weight (C, 3C) and plain (C, C) output projection — layout plumbing
    # done once in the wrapper, outside the kernel.
    wqkv = jnp.concatenate([params["wq"], params["wk"], params["wv"]], axis=1).astype(bf16)
    wo = params["wo"].astype(bf16)
    w1 = params["w1"].astype(bf16)
    w2 = params["w2"].astype(bf16)

    # Fold (B, T) into one row axis so the kernel's matmuls see M = bt*T rows.
    x2d = x.reshape(B * T, C).astype(jnp.float32)

    def resident():
        # Full-array VMEM resident (single-buffered), not pipeline double-buffered.
        return pl.BlockSpec(memory_space=pltpu.MemorySpace.VMEM)

    in_specs = [
        pl.BlockSpec((M, C), lambda i: (i, 0)),     # x slab (bt*T rows), pipelined
        resident(), resident(),                     # ln1 weight / bias (f32)
        resident(),                                 # fused Wqkv (C, 3C) bf16
        resident(), resident(),                     # proj W (C, C) bf16, proj b
        resident(), resident(),                     # ln2 weight / bias (f32)
        resident(), resident(),                     # ffwd W1, b1
        resident(), resident(),                     # ffwd W2, b2
    ]

    kernel = functools.partial(_block_kernel, n_head=n_head, bt=bt, seq_len=T)
    args = (x2d, params["ln1_w"], params["ln1_b"], wqkv, wo, params["bo"],
            params["ln2_w"], params["ln2_b"], w1, params["b1"], w2, params["b2"])

    out2d = pl.pallas_call(
        kernel,
        out_shape=jax.ShapeDtypeStruct((B * T, C), jnp.float32),
        grid_spec=pltpu.PrefetchScalarGridSpec(
            num_scalar_prefetch=0,
            grid=(B // bt,),
            in_specs=in_specs,
            out_specs=pl.BlockSpec((M, C), lambda i: (i, 0)),
        ),
        compiler_params=pltpu.CompilerParams(
            dimension_semantics=("parallel",),
            vmem_limit_bytes=_vmem_limit_bytes(bt, T, C, H, n_head, vmem_cap),
        ),
    )(*args)
    return out2d.reshape(B, T, C)


def init_params(key, n_embed):
    C, H = n_embed, 4 * n_embed
    ks = jax.random.split(key, 8)
    s = 0.02
    bf16 = jnp.bfloat16
    return {
        "ln1_w": jnp.ones((1, C), jnp.float32),
        "ln1_b": jnp.zeros((1, C), jnp.float32),
        "wq": (s * jax.random.normal(ks[0], (C, C), jnp.float32)).astype(bf16),
        "wk": (s * jax.random.normal(ks[1], (C, C), jnp.float32)).astype(bf16),
        "wv": (s * jax.random.normal(ks[2], (C, C), jnp.float32)).astype(bf16),
        "wo": (s * jax.random.normal(ks[3], (C, C), jnp.float32)).astype(bf16),
        "bo": s * jax.random.normal(ks[4], (1, C), jnp.float32),
        "ln2_w": jnp.ones((1, C), jnp.float32),
        "ln2_b": jnp.zeros((1, C), jnp.float32),
        "w1": (s * jax.random.normal(ks[5], (C, H), jnp.float32)).astype(bf16),
        "b1": jnp.zeros((1, H), jnp.float32),
        "w2": (s * jax.random.normal(ks[6], (H, C), jnp.float32)).astype(bf16),
        "b2": jnp.zeros((1, C), jnp.float32),
    }


def reference_block(x, p, n_head):
    """Pure-JAX f32 reference mirroring the PyTorch forward (eval mode)."""
    f32 = jnp.float32
    B, T, C = x.shape
    hs = C // n_head
    x = x.astype(f32)

    def ln(z, w, b, eps=1e-5):
        mu = jnp.mean(z, axis=-1, keepdims=True)
        var = jnp.mean(jnp.square(z - mu), axis=-1, keepdims=True)
        return (z - mu) * jax.lax.rsqrt(var + eps) * w[0] + b[0]

    xn = ln(x, p["ln1_w"], p["ln1_b"])
    q = xn @ p["wq"].astype(f32)
    k = xn @ p["wk"].astype(f32)
    v = xn @ p["wv"].astype(f32)
    mask = jnp.tril(jnp.ones((T, T), bool))
    outs = []
    for h in range(n_head):
        qh, kh, vh = (a[..., h * hs:(h + 1) * hs] for a in (q, k, v))
        wei = jnp.einsum("btd,bsd->bts", qh, kh) * C ** -0.5
        wei = jnp.where(mask, wei, -jnp.inf)
        wei = jax.nn.softmax(wei, axis=-1)
        outs.append(jnp.einsum("bts,bsd->btd", wei, vh))
    att = jnp.concatenate(outs, axis=-1)
    x1 = x + att @ p["wo"].astype(f32) + p["bo"][0]
    xn2 = ln(x1, p["ln2_w"], p["ln2_b"])
    ff = jnp.maximum(xn2 @ p["w1"].astype(f32) + p["b1"][0], 0.0) @ p["w2"].astype(f32) + p["b2"][0]
    return x1 + ff


if __name__ == "__main__":
    B, T, C, n_head = 2, 8, 32, 4        # block_size=8, n_embed=32, n_head=4
    key = jax.random.PRNGKey(0)
    kx, kp = jax.random.split(key)
    x = jax.random.normal(kx, (B, T, C), jnp.float32)
    params = init_params(kp, C)

    out = jax.block_until_ready(transformer_block(x, params, n_head))
    ref = jax.block_until_ready(reference_block(x, params, n_head))

    assert out.shape == (B, T, C)
    # bf16 matmul inputs + approx reciprocal => loosen tolerance vs. the f32 reference.
    max_err = float(jnp.max(jnp.abs(out - ref)))
    assert jnp.allclose(out, ref, atol=2e-2, rtol=2e-2), f"mismatch vs reference (max abs err {max_err:.3e})"
    print("KERNEL_OK")
</pallas_src>

<mosaic_0001>
module attributes {stable_mosaic.version = 11 : i64} {
  func.func @_block_kernel(%arg0: i32, %arg1: memref<16x32xf32, #tpu.memory_space<vmem>>, %arg2: memref<1x32xf32, #tpu.memory_space<vmem>>, %arg3: memref<1x32xf32, #tpu.memory_space<vmem>>, %arg4: memref<32x96xbf16, #tpu.memory_space<vmem>>, %arg5: memref<32x32xbf16, #tpu.memory_space<vmem>>, %arg6: memref<1x32xf32, #tpu.memory_space<vmem>>, %arg7: memref<1x32xf32, #tpu.memory_space<vmem>>, %arg8: memref<1x32xf32, #tpu.memory_space<vmem>>, %arg9: memref<32x128xbf16, #tpu.memory_space<vmem>>, %arg10: memref<1x128xf32, #tpu.memory_space<vmem>>, %arg11: memref<128x32xbf16, #tpu.memory_space<vmem>>, %arg12: memref<1x32xf32, #tpu.memory_space<vmem>>, %arg13: memref<16x32xf32, #tpu.memory_space<vmem>>) attributes {dimension_semantics = [#tpu.dimension_semantics<parallel>], iteration_bounds = array<i64: 1>, scalar_prefetch = 0 : i64, scratch_operands = 0 : i64, tpu.core_type = #tpu.core_type<tc>, window_params = [{transform_indices = @transform_0, window_bounds = array<i64: 16, 32>}, {pipeline_mode = #tpu.pipeline_mode<synchronous>, transform_indices = @transform_1, window_bounds = array<i64: 1, 32>}, {pipeline_mode = #tpu.pipeline_mode<synchronous>, transform_indices = @transform_2, window_bounds = array<i64: 1, 32>}, {pipeline_mode = #tpu.pipeline_mode<synchronous>, transform_indices = @transform_3, window_bounds = array<i64: 32, 96>}, {pipeline_mode = #tpu.pipeline_mode<synchronous>, transform_indices = @transform_4, window_bounds = array<i64: 32, 32>}, {pipeline_mode = #tpu.pipeline_mode<synchronous>, transform_indices = @transform_5, window_bounds = array<i64: 1, 32>}, {pipeline_mode = #tpu.pipeline_mode<synchronous>, transform_indices = @transform_6, window_bounds = array<i64: 1, 32>}, {pipeline_mode = #tpu.pipeline_mode<synchronous>, transform_indices = @transform_7, window_bounds = array<i64: 1, 32>}, {pipeline_mode = #tpu.pipeline_mode<synchronous>, transform_indices = @transform_8, window_bounds = array<i64: 32, 128>}, {pipeline_mode = #tpu.pipeline_mode<synchronous>, transform_indices = @transform_9, window_bounds = array<i64: 1, 128>}, {pipeline_mode = #tpu.pipeline_mode<synchronous>, transform_indices = @transform_10, window_bounds = array<i64: 128, 32>}, {pipeline_mode = #tpu.pipeline_mode<synchronous>, transform_indices = @transform_11, window_bounds = array<i64: 1, 32>}, {transform_indices = @transform_12, window_bounds = array<i64: 16, 32>}]} {
    %c0 = arith.constant 0 : index
    %c0_0 = arith.constant 0 : index
    %0 = vector.load %arg1[%c0, %c0_0] : memref<16x32xf32, #tpu.memory_space<vmem>>, vector<16x32xf32>
    %cst = arith.constant dense<0.000000e+00> : vector<16xf32>
    %1 = vector.multi_reduction <add>, %0, %cst [1] : vector<16x32xf32> to vector<16xf32>
    %2 = vector.shape_cast %1 : vector<16xf32> to vector<16x1xf32>
    %cst_1 = arith.constant 3.200000e+01 : f32
    %3 = vector.broadcast %cst_1 : f32 to vector<16x1xf32>
    %4 = arith.divf %2, %3 : vector<16x1xf32>
    %5 = vector.broadcast %4 : vector<16x1xf32> to vector<16x32xf32>
    %6 = arith.subf %0, %5 : vector<16x32xf32>
    %7 = arith.mulf %6, %6 : vector<16x32xf32>
    %cst_2 = arith.constant dense<0.000000e+00> : vector<16xf32>
    %8 = vector.multi_reduction <add>, %7, %cst_2 [1] : vector<16x32xf32> to vector<16xf32>
    %9 = vector.shape_cast %8 : vector<16xf32> to vector<16x1xf32>
    %cst_3 = arith.constant 3.200000e+01 : f32
    %10 = vector.broadcast %cst_3 : f32 to vector<16x1xf32>
    %11 = arith.divf %9, %10 : vector<16x1xf32>
    %12 = vector.broadcast %4 : vector<16x1xf32> to vector<16x32xf32>
    %13 = arith.subf %0, %12 : vector<16x32xf32>
    %cst_4 = arith.constant 9.99999974E-6 : f32
    %14 = vector.broadcast %cst_4 : f32 to vector<16x1xf32>
    %15 = arith.addf %11, %14 : vector<16x1xf32>
    %16 = math.rsqrt %15 : vector<16x1xf32>
    %17 = vector.broadcast %16 : vector<16x1xf32> to vector<16x32xf32>
    %18 = arith.mulf %13, %17 : vector<16x32xf32>
    %c0_5 = arith.constant 0 : index
    %c0_6 = arith.constant 0 : index
    %19 = vector.load %arg2[%c0_5, %c0_6] : memref<1x32xf32, #tpu.memory_space<vmem>>, vector<1x32xf32>
    %20 = vector.shape_cast %19 : vector<1x32xf32> to vector<32xf32>
    %21 = vector.shape_cast %20 : vector<32xf32> to vector<1x32xf32>
    %22 = vector.broadcast %21 : vector<1x32xf32> to vector<16x32xf32>
    %23 = arith.mulf %18, %22 : vector<16x32xf32>
    %c0_7 = arith.constant 0 : index
    %c0_8 = arith.constant 0 : index
    %24 = vector.load %arg3[%c0_7, %c0_8] : memref<1x32xf32, #tpu.memory_space<vmem>>, vector<1x32xf32>
    %25 = vector.shape_cast %24 : vector<1x32xf32> to vector<32xf32>
    %26 = vector.shape_cast %25 : vector<32xf32> to vector<1x32xf32>
    %27 = vector.broadcast %26 : vector<1x32xf32> to vector<16x32xf32>
    %28 = arith.addf %23, %27 : vector<16x32xf32>
    %29 = arith.truncf %28 : vector<16x32xf32> to vector<16x32xbf16>
    %c0_9 = arith.constant 0 : index
    %c0_10 = arith.constant 0 : index
    %30 = vector.load %arg4[%c0_9, %c0_10] : memref<32x96xbf16, #tpu.memory_space<vmem>>, vector<32x96xbf16>
    %cst_11 = arith.constant dense<0.000000e+00> : vector<16x96xf32>
    %31 = tpu.matmul %29, %30, %cst_11 {dimension_numbers = #tpu.dot_dimension_numbers<[1], [0], [0], [1], [0, 0, 1, 1], [], []>} : vector<16x32xbf16>, vector<32x96xbf16>, vector<16x96xf32> -> vector<16x96xf32>
    %32 = vector.extract_strided_slice %31 {offsets = [0, 0], sizes = [16, 32], strides = [1, 1]} : vector<16x96xf32> to vector<16x32xf32>
    %cst_12 = arith.constant 0.176776692 : f32
    %33 = vector.broadcast %cst_12 : f32 to vector<16x32xf32>
    %34 = arith.mulf %32, %33 : vector<16x32xf32>
    %35 = arith.truncf %34 : vector<16x32xf32> to vector<16x32xbf16>
    %36 = vector.shape_cast %35 : vector<16x32xbf16> to vector<2x8x32xbf16>
    %37 = vector.extract_strided_slice %31 {offsets = [0, 32], sizes = [16, 32], strides = [1, 1]} : vector<16x96xf32> to vector<16x32xf32>
    %38 = arith.truncf %37 : vector<16x32xf32> to vector<16x32xbf16>
    %39 = vector.shape_cast %38 : vector<16x32xbf16> to vector<2x8x32xbf16>
    %40 = vector.extract_strided_slice %31 {offsets = [0, 64], sizes = [16, 32], strides = [1, 1]} : vector<16x96xf32> to vector<16x32xf32>
    %41 = arith.truncf %40 : vector<16x32xf32> to vector<16x32xbf16>
    %42 = vector.shape_cast %41 : vector<16x32xbf16> to vector<2x8x32xbf16>
    %43 = tpu.iota {dimensions = array<i32: 0>} : vector<8x8xi32>
    %44 = tpu.iota {dimensions = array<i32: 1>} : vector<8x8xi32>
    %45 = arith.cmpi sle, %44, %43 : vector<8x8xi32>
    %cst_13 = arith.constant 0.000000e+00 : f32
    %cst_14 = arith.constant -1.000000e+30 : f32
    %46 = vector.broadcast %cst_13 : f32 to vector<8x8xf32>
    %47 = vector.broadcast %cst_14 : f32 to vector<8x8xf32>
    %48 = arith.select %45, %46, %47 : vector<8x8xi1>, vector<8x8xf32>
    %49 = vector.extract_strided_slice %36 {offsets = [0, 0, 0], sizes = [2, 8, 8], strides = [1, 1, 1]} : vector<2x8x32xbf16> to vector<2x8x8xbf16>
    %50 = vector.extract_strided_slice %39 {offsets = [0, 0, 0], sizes = [2, 8, 8], strides = [1, 1, 1]} : vector<2x8x32xbf16> to vector<2x8x8xbf16>
    %51 = vector.extract_strided_slice %42 {offsets = [0, 0, 0], sizes = [2, 8, 8], strides = [1, 1, 1]} : vector<2x8x32xbf16> to vector<2x8x8xbf16>
    "tpu.trace_start"() <{level = 10 : i32, message = "btd,bsd->bts"}> : () -> ()
    %cst_15 = arith.constant dense<0.000000e+00> : vector<2x8x8xf32>
    %52 = tpu.matmul %49, %50, %cst_15 {dimension_numbers = #tpu.dot_dimension_numbers<[2], [2], [1], [1], [0, 0, 0, 1, 1, 1], [0], [0]>} : vector<2x8x8xbf16>, vector<2x8x8xbf16>, vector<2x8x8xf32> -> vector<2x8x8xf32>
    "tpu.trace_stop"() : () -> ()
    %53 = vector.shape_cast %48 : vector<8x8xf32> to vector<1x8x8xf32>
    %54 = vector.broadcast %53 : vector<1x8x8xf32> to vector<2x8x8xf32>
    %55 = arith.addf %52, %54 : vector<2x8x8xf32>
    %cst_16 = arith.constant dense<0xFF800000> : vector<2x8xf32>
    %56 = vector.multi_reduction <maximumf>, %55, %cst_16 [2] : vector<2x8x8xf32> to vector<2x8xf32>
    %57 = vector.shape_cast %56 : vector<2x8xf32> to vector<2x8x1xf32>
    %58 = vector.broadcast %57 : vector<2x8x1xf32> to vector<2x8x8xf32>
    %59 = arith.subf %55, %58 : vector<2x8x8xf32>
    %60 = math.exp %59 : vector<2x8x8xf32>
    %cst_17 = arith.constant dense<0.000000e+00> : vector<2x8xf32>
    %61 = vector.multi_reduction <add>, %60, %cst_17 [2] : vector<2x8x8xf32> to vector<2x8xf32>
    %62 = vector.shape_cast %61 : vector<2x8xf32> to vector<2x8x1xf32>
    %63 = tpu.reciprocal %62 {approx = true} : vector<2x8x1xf32> -> vector<2x8x1xf32>
    %64 = vector.broadcast %63 : vector<2x8x1xf32> to vector<2x8x8xf32>
    %65 = arith.mulf %60, %64 : vector<2x8x8xf32>
    %66 = arith.truncf %65 : vector<2x8x8xf32> to vector<2x8x8xbf16>
    "tpu.trace_start"() <{level = 10 : i32, message = "bts,bsd->btd"}> : () -> ()
    %cst_18 = arith.constant dense<0.000000e+00> : vector<2x8x8xf32>
    %67 = tpu.matmul %66, %51, %cst_18 {dimension_numbers = #tpu.dot_dimension_numbers<[2], [1], [1], [2], [0, 0, 0, 1, 1, 2], [0], [0]>} : vector<2x8x8xbf16>, vector<2x8x8xbf16>, vector<2x8x8xf32> -> vector<2x8x8xf32>
    "tpu.trace_stop"() : () -> ()
    %68 = vector.extract_strided_slice %36 {offsets = [0, 0, 8], sizes = [2, 8, 8], strides = [1, 1, 1]} : vector<2x8x32xbf16> to vector<2x8x8xbf16>
    %69 = vector.extract_strided_slice %39 {offsets = [0, 0, 8], sizes = [2, 8, 8], strides = [1, 1, 1]} : vector<2x8x32xbf16> to vector<2x8x8xbf16>
    %70 = vector.extract_strided_slice %42 {offsets = [0, 0, 8], sizes = [2, 8, 8], strides = [1, 1, 1]} : vector<2x8x32xbf16> to vector<2x8x8xbf16>
    "tpu.trace_start"() <{level = 10 : i32, message = "btd,bsd->bts"}> : () -> ()
    %cst_19 = arith.constant dense<0.000000e+00> : vector<2x8x8xf32>
    %71 = tpu.matmul %68, %69, %cst_19 {dimension_numbers = #tpu.dot_dimension_numbers<[2], [2], [1], [1], [0, 0, 0, 1, 1, 1], [0], [0]>} : vector<2x8x8xbf16>, vector<2x8x8xbf16>, vector<2x8x8xf32> -> vector<2x8x8xf32>
    "tpu.trace_stop"() : () -> ()
    %72 = vector.shape_cast %48 : vector<8x8xf32> to vector<1x8x8xf32>
    %73 = vector.broadcast %72 : vector<1x8x8xf32> to vector<2x8x8xf32>
    %74 = arith.addf %71, %73 : vector<2x8x8xf32>
    %cst_20 = arith.constant dense<0xFF800000> : vector<2x8xf32>
    %75 = vector.multi_reduction <maximumf>, %74, %cst_20 [2] : vector<2x8x8xf32> to vector<2x8xf32>
    %76 = vector.shape_cast %75 : vector<2x8xf32> to vector<2x8x1xf32>
    %77 = vector.broadcast %76 : vector<2x8x1xf32> to vector<2x8x8xf32>
    %78 = arith.subf %74, %77 : vector<2x8x8xf32>
    %79 = math.exp %78 : vector<2x8x8xf32>
    %cst_21 = arith.constant dense<0.000000e+00> : vector<2x8xf32>
    %80 = vector.multi_reduction <add>, %79, %cst_21 [2] : vector<2x8x8xf32> to vector<2x8xf32>
    %81 = vector.shape_cast %80 : vector<2x8xf32> to vector<2x8x1xf32>
    %82 = tpu.reciprocal %81 {approx = true} : vector<2x8x1xf32> -> vector<2x8x1xf32>
    %83 = vector.broadcast %82 : vector<2x8x1xf32> to vector<2x8x8xf32>
    %84 = arith.mulf %79, %83 : vector<2x8x8xf32>
    %85 = arith.truncf %84 : vector<2x8x8xf32> to vector<2x8x8xbf16>
    "tpu.trace_start"() <{level = 10 : i32, message = "bts,bsd->btd"}> : () -> ()
    %cst_22 = arith.constant dense<0.000000e+00> : vector<2x8x8xf32>
    %86 = tpu.matmul %85, %70, %cst_22 {dimension_numbers = #tpu.dot_dimension_numbers<[2], [1], [1], [2], [0, 0, 0, 1, 1, 2], [0], [0]>} : vector<2x8x8xbf16>, vector<2x8x8xbf16>, vector<2x8x8xf32> -> vector<2x8x8xf32>
    "tpu.trace_stop"() : () -> ()
    %87 = vector.extract_strided_slice %36 {offsets = [0, 0, 16], sizes = [2, 8, 8], strides = [1, 1, 1]} : vector<2x8x32xbf16> to vector<2x8x8xbf16>
    %88 = vector.extract_strided_slice %39 {offsets = [0, 0, 16], sizes = [2, 8, 8], strides = [1, 1, 1]} : vector<2x8x32xbf16> to vector<2x8x8xbf16>
    %89 = vector.extract_strided_slice %42 {offsets = [0, 0, 16], sizes = [2, 8, 8], strides = [1, 1, 1]} : vector<2x8x32xbf16> to vector<2x8x8xbf16>
    "tpu.trace_start"() <{level = 10 : i32, message = "btd,bsd->bts"}> : () -> ()
    %cst_23 = arith.constant dense<0.000000e+00> : vector<2x8x8xf32>
    %90 = tpu.matmul %87, %88, %cst_23 {dimension_numbers = #tpu.dot_dimension_numbers<[2], [2], [1], [1], [0, 0, 0, 1, 1, 1], [0], [0]>} : vector<2x8x8xbf16>, vector<2x8x8xbf16>, vector<2x8x8xf32> -> vector<2x8x8xf32>
    "tpu.trace_stop"() : () -> ()
    %91 = vector.shape_cast %48 : vector<8x8xf32> to vector<1x8x8xf32>
    %92 = vector.broadcast %91 : vector<1x8x8xf32> to vector<2x8x8xf32>
    %93 = arith.addf %90, %92 : vector<2x8x8xf32>
    %cst_24 = arith.constant dense<0xFF800000> : vector<2x8xf32>
    %94 = vector.multi_reduction <maximumf>, %93, %cst_24 [2] : vector<2x8x8xf32> to vector<2x8xf32>
    %95 = vector.shape_cast %94 : vector<2x8xf32> to vector<2x8x1xf32>
    %96 = vector.broadcast %95 : vector<2x8x1xf32> to vector<2x8x8xf32>
    %97 = arith.subf %93, %96 : vector<2x8x8xf32>
    %98 = math.exp %97 : vector<2x8x8xf32>
    %cst_25 = arith.constant dense<0.000000e+00> : vector<2x8xf32>
    %99 = vector.multi_reduction <add>, %98, %cst_25 [2] : vector<2x8x8xf32> to vector<2x8xf32>
    %100 = vector.shape_cast %99 : vector<2x8xf32> to vector<2x8x1xf32>
    %101 = tpu.reciprocal %100 {approx = true} : vector<2x8x1xf32> -> vector<2x8x1xf32>
    %102 = vector.broadcast %101 : vector<2x8x1xf32> to vector<2x8x8xf32>
    %103 = arith.mulf %98, %102 : vector<2x8x8xf32>
    %104 = arith.truncf %103 : vector<2x8x8xf32> to vector<2x8x8xbf16>
    "tpu.trace_start"() <{level = 10 : i32, message = "bts,bsd->btd"}> : () -> ()
    %cst_26 = arith.constant dense<0.000000e+00> : vector<2x8x8xf32>
    %105 = tpu.matmul %104, %89, %cst_26 {dimension_numbers = #tpu.dot_dimension_numbers<[2], [1], [1], [2], [0, 0, 0, 1, 1, 2], [0], [0]>} : vector<2x8x8xbf16>, vector<2x8x8xbf16>, vector<2x8x8xf32> -> vector<2x8x8xf32>
    "tpu.trace_stop"() : () -> ()
    %106 = vector.extract_strided_slice %36 {offsets = [0, 0, 24], sizes = [2, 8, 8], strides = [1, 1, 1]} : vector<2x8x32xbf16> to vector<2x8x8xbf16>
    %107 = vector.extract_strided_slice %39 {offsets = [0, 0, 24], sizes = [2, 8, 8], strides = [1, 1, 1]} : vector<2x8x32xbf16> to vector<2x8x8xbf16>
    %108 = vector.extract_strided_slice %42 {offsets = [0, 0, 24], sizes = [2, 8, 8], strides = [1, 1, 1]} : vector<2x8x32xbf16> to vector<2x8x8xbf16>
    "tpu.trace_start"() <{level = 10 : i32, message = "btd,bsd->bts"}> : () -> ()
    %cst_27 = arith.constant dense<0.000000e+00> : vector<2x8x8xf32>
    %109 = tpu.matmul %106, %107, %cst_27 {dimension_numbers = #tpu.dot_dimension_numbers<[2], [2], [1], [1], [0, 0, 0, 1, 1, 1], [0], [0]>} : vector<2x8x8xbf16>, vector<2x8x8xbf16>, vector<2x8x8xf32> -> vector<2x8x8xf32>
    "tpu.trace_stop"() : () -> ()
    %110 = vector.shape_cast %48 : vector<8x8xf32> to vector<1x8x8xf32>
    %111 = vector.broadcast %110 : vector<1x8x8xf32> to vector<2x8x8xf32>
    %112 = arith.addf %109, %111 : vector<2x8x8xf32>
    %cst_28 = arith.constant dense<0xFF800000> : vector<2x8xf32>
    %113 = vector.multi_reduction <maximumf>, %112, %cst_28 [2] : vector<2x8x8xf32> to vector<2x8xf32>
    %114 = vector.shape_cast %113 : vector<2x8xf32> to vector<2x8x1xf32>
    %115 = vector.broadcast %114 : vector<2x8x1xf32> to vector<2x8x8xf32>
    %116 = arith.subf %112, %115 : vector<2x8x8xf32>
    %117 = math.exp %116 : vector<2x8x8xf32>
    %cst_29 = arith.constant dense<0.000000e+00> : vector<2x8xf32>
    %118 = vector.multi_reduction <add>, %117, %cst_29 [2] : vector<2x8x8xf32> to vector<2x8xf32>
    %119 = vector.shape_cast %118 : vector<2x8xf32> to vector<2x8x1xf32>
    %120 = tpu.reciprocal %119 {approx = true} : vector<2x8x1xf32> -> vector<2x8x1xf32>
    %121 = vector.broadcast %120 : vector<2x8x1xf32> to vector<2x8x8xf32>
    %122 = arith.mulf %117, %121 : vector<2x8x8xf32>
    %123 = arith.truncf %122 : vector<2x8x8xf32> to vector<2x8x8xbf16>
    "tpu.trace_start"() <{level = 10 : i32, message = "bts,bsd->btd"}> : () -> ()
    %cst_30 = arith.constant dense<0.000000e+00> : vector<2x8x8xf32>
    %124 = tpu.matmul %123, %108, %cst_30 {dimension_numbers = #tpu.dot_dimension_numbers<[2], [1], [1], [2], [0, 0, 0, 1, 1, 2], [0], [0]>} : vector<2x8x8xbf16>, vector<2x8x8xbf16>, vector<2x8x8xf32> -> vector<2x8x8xf32>
    "tpu.trace_stop"() : () -> ()
    %125 = tpu.concatenate %67, %86, %105, %124 in 2 : vector<2x8x8xf32>, vector<2x8x8xf32>, vector<2x8x8xf32>, vector<2x8x8xf32> -> vector<2x8x32xf32>
    %126 = vector.shape_cast %125 : vector<2x8x32xf32> to vector<16x32xf32>
    %127 = arith.truncf %126 : vector<16x32xf32> to vector<16x32xbf16>
    %c0_31 = arith.constant 0 : index
    %c0_32 = arith.constant 0 : index
    %128 = vector.load %arg5[%c0_31, %c0_32] : memref<32x32xbf16, #tpu.memory_space<vmem>>, vector<32x32xbf16>
    %cst_33 = arith.constant dense<0.000000e+00> : vector<16x32xf32>
    %129 = tpu.matmul %127, %128, %cst_33 {dimension_numbers = #tpu.dot_dimension_numbers<[1], [0], [0], [1], [0, 0, 1, 1], [], []>} : vector<16x32xbf16>, vector<32x32xbf16>, vector<16x32xf32> -> vector<16x32xf32>
    %c0_34 = arith.constant 0 : index
    %c0_35 = arith.constant 0 : index
    %130 = vector.load %arg6[%c0_34, %c0_35] : memref<1x32xf32, #tpu.memory_space<vmem>>, vector<1x32xf32>
    %131 = vector.shape_cast %130 : vector<1x32xf32> to vector<32xf32>
    %132 = vector.shape_cast %131 : vector<32xf32> to vector<1x32xf32>
    %133 = vector.broadcast %132 : vector<1x32xf32> to vector<16x32xf32>
    %134 = arith.addf %129, %133 : vector<16x32xf32>
    %135 = arith.addf %0, %134 : vector<16x32xf32>
    %cst_36 = arith.constant dense<0.000000e+00> : vector<16xf32>
    %136 = vector.multi_reduction <add>, %135, %cst_36 [1] : vector<16x32xf32> to vector<16xf32>
    %137 = vector.shape_cast %136 : vector<16xf32> to vector<16x1xf32>
    %cst_37 = arith.constant 3.200000e+01 : f32
    %138 = vector.broadcast %cst_37 : f32 to vector<16x1xf32>
    %139 = arith.divf %137, %138 : vector<16x1xf32>
    %140 = vector.broadcast %139 : vector<16x1xf32> to vector<16x32xf32>
    %141 = arith.subf %135, %140 : vector<16x32xf32>
    %142 = arith.mulf %141, %141 : vector<16x32xf32>
    %cst_38 = arith.constant dense<0.000000e+00> : vector<16xf32>
    %143 = vector.multi_reduction <add>, %142, %cst_38 [1] : vector<16x32xf32> to vector<16xf32>
    %144 = vector.shape_cast %143 : vector<16xf32> to vector<16x1xf32>
    %cst_39 = arith.constant 3.200000e+01 : f32
    %145 = vector.broadcast %cst_39 : f32 to vector<16x1xf32>
    %146 = arith.divf %144, %145 : vector<16x1xf32>
    %147 = vector.broadcast %139 : vector<16x1xf32> to vector<16x32xf32>
    %148 = arith.subf %135, %147 : vector<16x32xf32>
    %cst_40 = arith.constant 9.99999974E-6 : f32
    %149 = vector.broadcast %cst_40 : f32 to vector<16x1xf32>
    %150 = arith.addf %146, %149 : vector<16x1xf32>
    %151 = math.rsqrt %150 : vector<16x1xf32>
    %152 = vector.broadcast %151 : vector<16x1xf32> to vector<16x32xf32>
    %153 = arith.mulf %148, %152 : vector<16x32xf32>
    %c0_41 = arith.constant 0 : index
    %c0_42 = arith.constant 0 : index
    %154 = vector.load %arg7[%c0_41, %c0_42] : memref<1x32xf32, #tpu.memory_space<vmem>>, vector<1x32xf32>
    %155 = vector.shape_cast %154 : vector<1x32xf32> to vector<32xf32>
    %156 = vector.shape_cast %155 : vector<32xf32> to vector<1x32xf32>
    %157 = vector.broadcast %156 : vector<1x32xf32> to vector<16x32xf32>
    %158 = arith.mulf %153, %157 : vector<16x32xf32>
    %c0_43 = arith.constant 0 : index
    %c0_44 = arith.constant 0 : index
    %159 = vector.load %arg8[%c0_43, %c0_44] : memref<1x32xf32, #tpu.memory_space<vmem>>, vector<1x32xf32>
    %160 = vector.shape_cast %159 : vector<1x32xf32> to vector<32xf32>
    %161 = vector.shape_cast %160 : vector<32xf32> to vector<1x32xf32>
    %162 = vector.broadcast %161 : vector<1x32xf32> to vector<16x32xf32>
    %163 = arith.addf %158, %162 : vector<16x32xf32>
    %164 = arith.truncf %163 : vector<16x32xf32> to vector<16x32xbf16>
    %c0_45 = arith.constant 0 : index
    %c0_46 = arith.constant 0 : index
    %165 = vector.load %arg9[%c0_45, %c0_46] : memref<32x128xbf16, #tpu.memory_space<vmem>>, vector<32x128xbf16>
    %cst_47 = arith.constant dense<0.000000e+00> : vector<16x128xf32>
    %166 = tpu.matmul %164, %165, %cst_47 {dimension_numbers = #tpu.dot_dimension_numbers<[1], [0], [0], [1], [0, 0, 1, 1], [], []>} : vector<16x32xbf16>, vector<32x128xbf16>, vector<16x128xf32> -> vector<16x128xf32>
    %c0_48 = arith.constant 0 : index
    %c0_49 = arith.constant 0 : index
    %167 = vector.load %arg10[%c0_48, %c0_49] : memref<1x128xf32, #tpu.memory_space<vmem>>, vector<1x128xf32>
    %168 = vector.shape_cast %167 : vector<1x128xf32> to vector<128xf32>
    %169 = vector.shape_cast %168 : vector<128xf32> to vector<1x128xf32>
    %170 = vector.broadcast %169 : vector<1x128xf32> to vector<16x128xf32>
    %171 = arith.addf %166, %170 : vector<16x128xf32>
    %cst_50 = arith.constant 0.000000e+00 : f32
    %172 = vector.broadcast %cst_50 : f32 to vector<16x128xf32>
    %173 = arith.maximumf %171, %172 : vector<16x128xf32>
    %174 = arith.truncf %173 : vector<16x128xf32> to vector<16x128xbf16>
    %c0_51 = arith.constant 0 : index
    %c0_52 = arith.constant 0 : index
    %175 = vector.load %arg11[%c0_51, %c0_52] : memref<128x32xbf16, #tpu.memory_space<vmem>>, vector<128x32xbf16>
    %cst_53 = arith.constant dense<0.000000e+00> : vector<16x32xf32>
    %176 = tpu.matmul %174, %175, %cst_53 {dimension_numbers = #tpu.dot_dimension_numbers<[1], [0], [0], [1], [0, 0, 1, 1], [], []>} : vector<16x128xbf16>, vector<128x32xbf16>, vector<16x32xf32> -> vector<16x32xf32>
    %c0_54 = arith.constant 0 : index
    %c0_55 = arith.constant 0 : index
    %177 = vector.load %arg12[%c0_54, %c0_55] : memref<1x32xf32, #tpu.memory_space<vmem>>, vector<1x32xf32>
    %178 = vector.shape_cast %177 : vector<1x32xf32> to vector<32xf32>
    %179 = vector.shape_cast %178 : vector<32xf32> to vector<1x32xf32>
    %180 = vector.broadcast %179 : vector<1x32xf32> to vector<16x32xf32>
    %181 = arith.addf %176, %180 : vector<16x32xf32>
    %182 = arith.addf %135, %181 : vector<16x32xf32>
    %c0_56 = arith.constant 0 : index
    %c0_57 = arith.constant 0 : index
    %183 = vector.load %arg13[%c0_56, %c0_57] : memref<16x32xf32, #tpu.memory_space<vmem>>, vector<16x32xf32>
    tpu.vector_store %arg13[%c0_56, %c0_57], %182 {strides = array<i32>} : memref<16x32xf32, #tpu.memory_space<vmem>>, vector<16x32xf32>,
    return
  }
  func.func @transform_0(%arg0: i32) -> (i32, i32) {
    %c0_i32 = arith.constant 0 : i32
    %c0_i32_0 = arith.constant 0 : i32
    return %arg0, %c0_i32 : i32, i32
  }
  func.func @transform_1(%arg0: i32) -> (i32, i32) {
    %c0_i32 = arith.constant 0 : i32
    %c0_i32_0 = arith.constant 0 : i32
    %c0_i32_1 = arith.constant 0 : i32
    return %c0_i32, %c0_i32_0 : i32, i32
  }
  func.func @transform_2(%arg0: i32) -> (i32, i32) {
    %c0_i32 = arith.constant 0 : i32
    %c0_i32_0 = arith.constant 0 : i32
    %c0_i32_1 = arith.constant 0 : i32
    return %c0_i32, %c0_i32_0 : i32, i32
  }
  func.func @transform_3(%arg0: i32) -> (i32, i32) {
    %c0_i32 = arith.constant 0 : i32
    %c0_i32_0 = arith.constant 0 : i32
    %c0_i32_1 = arith.constant 0 : i32
    return %c0_i32, %c0_i32_0 : i32, i32
  }
  func.func @transform_4(%arg0: i32) -> (i32, i32) {
    %c0_i32 = arith.constant 0 : i32
    %c0_i32_0 = arith.constant 0 : i32
    %c0_i32_1 = arith.constant 0 : i32
    return %c0_i32, %c0_i32_0 : i32, i32
  }
  func.func @transform_5(%arg0: i32) -> (i32, i32) {
    %c0_i32 = arith.constant 0 : i32
    %c0_i32_0 = arith.constant 0 : i32
    %c0_i32_1 = arith.constant 0 : i32
    return %c0_i32, %c0_i32_0 : i32, i32
  }
  func.func @transform_6(%arg0: i32) -> (i32, i32) {
    %c0_i32 = arith.constant 0 : i32
    %c0_i32_0 = arith.constant 0 : i32
    %c0_i32_1 = arith.constant 0 : i32
    return %c0_i32, %c0_i32_0 : i32, i32
  }
  func.func @transform_7(%arg0: i32) -> (i32, i32) {
    %c0_i32 = arith.constant 0 : i32
    %c0_i32_0 = arith.constant 0 : i32
    %c0_i32_1 = arith.constant 0 : i32
    return %c0_i32, %c0_i32_0 : i32, i32
  }
  func.func @transform_8(%arg0: i32) -> (i32, i32) {
    %c0_i32 = arith.constant 0 : i32
    %c0_i32_0 = arith.constant 0 : i32
    %c0_i32_1 = arith.constant 0 : i32
    return %c0_i32, %c0_i32_0 : i32, i32
  }
  func.func @transform_9(%arg0: i32) -> (i32, i32) {
    %c0_i32 = arith.constant 0 : i32
    %c0_i32_0 = arith.constant 0 : i32
    %c0_i32_1 = arith.constant 0 : i32
    return %c0_i32, %c0_i32_0 : i32, i32
  }
  func.func @transform_10(%arg0: i32) -> (i32, i32) {
    %c0_i32 = arith.constant 0 : i32
    %c0_i32_0 = arith.constant 0 : i32
    %c0_i32_1 = arith.constant 0 : i32
    return %c0_i32, %c0_i32_0 : i32, i32
  }
  func.func @transform_11(%arg0: i32) -> (i32, i32) {
    %c0_i32 = arith.constant 0 : i32
    %c0_i32_0 = arith.constant 0 : i32
    %c0_i32_1 = arith.constant 0 : i32
    return %c0_i32, %c0_i32_0 : i32, i32
  }
  func.func @transform_12(%arg0: i32) -> (i32, i32) {
    %c0_i32 = arith.constant 0 : i32
    %c0_i32_0 = arith.constant 0 : i32
    return %arg0, %c0_i32 : i32, i32
  }
}

</mosaic_0001>

<llo_original>
// kernel: tpu_custom_call.1
$region0: #{tpu_custom_call.1}
  #allocation0 [shape = 'u32[]', space=smem, size = 0x4, offset = 0x4, fixed_abs, tag = 'smem constant byte address 0x4 - core index']
  #allocation1 [shape = 'u32[72,128]{1,0:T(1,128)}', space=vmem, size = 0x9000, scoped, tag = 'internal scratch']
  %s0 = inlined_call_operand.vmem [shape: f32[16,32], index: 0, kind: input, shape index: {}]
  %s1 = inlined_call_operand.vmem [shape: f32[1,32], index: 1, kind: input, shape index: {}]
  %s2 = inlined_call_operand.vmem [shape: f32[1,32], index: 2, kind: input, shape index: {}]
  %s3 = inlined_call_operand.vmem [shape: bf16[32,96], index: 3, kind: input, shape index: {}]
  %s4 = inlined_call_operand.vmem [shape: bf16[32,32], index: 4, kind: input, shape index: {}]
  %s5 = inlined_call_operand.vmem [shape: f32[1,32], index: 5, kind: input, shape index: {}]
  %s6 = inlined_call_operand.vmem [shape: f32[1,32], index: 6, kind: input, shape index: {}]
  %s7 = inlined_call_operand.vmem [shape: f32[1,32], index: 7, kind: input, shape index: {}]
  %s8 = inlined_call_operand.vmem [shape: bf16[32,128], index: 8, kind: input, shape index: {}]
  %s9 = inlined_call_operand.vmem [shape: f32[1,128], index: 9, kind: input, shape index: {}]
  %s10 = inlined_call_operand.vmem [shape: bf16[128,32], index: 10, kind: input, shape index: {}]
  %s11 = inlined_call_operand.vmem [shape: f32[1,32], index: 11, kind: input, shape index: {}]
  %s12 = inlined_call_operand.hbm [shape: f32[16,32], index: 12, kind: output, shape index: {}]
  %s13 = sld [smem:[#allocation0]]
  $region58: #{tpu_custom_call.1} parent=0
    _
  %s15 = ssub.s32 1, %s13
  %s16 = scalar_select 0, %s15, %s13
  $region1: #{tpu_custom_call.1} parent=0
    #allocation2 [shape = 'u8[8192]{0}', space=vmem, size = 0x2000, scoped, tag = 'output window, operand 0, single buffered']
    #allocation3 [shape = 's32[1]{0}', space=sflag, size = 0x4, scoped, tag = 'scoped memory for tpu_custom_call.1']
    %17 = vsyncpa [#allocation3], 0
    // Predicated region
    $region2: #{tpu_custom_call.1} parent=1 // pred_check
      _
    $region3: #{tpu_custom_call.1} parent=1 // pred_check_branch
      %19 = sbr.rel (0) target = $region5
    $region4: #{tpu_custom_call.1} parent=1 // pred_region
      _
    $region5: #{tpu_custom_call.1} parent=1 // pred_fallthru
      _
    // Predicated region
    $region6: #{tpu_custom_call.1} parent=1 // pred_check
      _
    $region7: #{tpu_custom_call.1} parent=1 // pred_check_branch
      %21 = sbr.rel (0) target = $region9
    $region8: #{tpu_custom_call.1} parent=1 // pred_region
      _
    $region9: #{tpu_custom_call.1} parent=1 // pred_fallthru
      _
    // Predicated region
    $region10: #{tpu_custom_call.1} parent=1 // pred_check
      _
    $region11: #{tpu_custom_call.1} parent=1 // pred_check_branch
      %23 = sbr.rel (0) target = $region13
    $region12: #{tpu_custom_call.1} parent=1 // pred_region
      _
    $region13: #{tpu_custom_call.1} parent=1 // pred_fallthru
      _
    // Predicated region
    $region14: #{tpu_custom_call.1} parent=1 // pred_check
      _
    $region15: #{tpu_custom_call.1} parent=1 // pred_check_branch
      %25 = sbr.rel (0) target = $region17
    $region16: #{tpu_custom_call.1} parent=1 // pred_region
      _
    $region17: #{tpu_custom_call.1} parent=1 // pred_fallthru
      _
    // Predicated region
    $region18: #{tpu_custom_call.1} parent=1 // pred_check
      _
    $region19: #{tpu_custom_call.1} parent=1 // pred_check_branch
      %27 = sbr.rel (0) target = $region21
    $region20: #{tpu_custom_call.1} parent=1 // pred_region
      _
    $region21: #{tpu_custom_call.1} parent=1 // pred_fallthru
      _
    // Predicated region
    $region22: #{tpu_custom_call.1} parent=1 // pred_check
      _
    $region23: #{tpu_custom_call.1} parent=1 // pred_check_branch
      %29 = sbr.rel (0) target = $region25
    $region24: #{tpu_custom_call.1} parent=1 // pred_region
      _
    $region25: #{tpu_custom_call.1} parent=1 // pred_fallthru
      _
    // Predicated region
    $region26: #{tpu_custom_call.1} parent=1 // pred_check
      _
    $region27: #{tpu_custom_call.1} parent=1 // pred_check_branch
      %31 = sbr.rel (0) target = $region29
    $region28: #{tpu_custom_call.1} parent=1 // pred_region
      _
    $region29: #{tpu_custom_call.1} parent=1 // pred_fallthru
      _
    // Predicated region
    $region30: #{tpu_custom_call.1} parent=1 // pred_check
      _
    $region31: #{tpu_custom_call.1} parent=1 // pred_check_branch
      %33 = sbr.rel (0) target = $region33
    $region32: #{tpu_custom_call.1} parent=1 // pred_region
      _
    $region33: #{tpu_custom_call.1} parent=1 // pred_fallthru
      _
    // Predicated region
    $region34: #{tpu_custom_call.1} parent=1 // pred_check
      _
    $region35: #{tpu_custom_call.1} parent=1 // pred_check_branch
      %35 = sbr.rel (0) target = $region37
    $region36: #{tpu_custom_call.1} parent=1 // pred_region
      _
    $region37: #{tpu_custom_call.1} parent=1 // pred_fallthru
      _
    // Predicated region
    $region38: #{tpu_custom_call.1} parent=1 // pred_check
      _
    $region39: #{tpu_custom_call.1} parent=1 // pred_check_branch
      %37 = sbr.rel (0) target = $region41
    $region40: #{tpu_custom_call.1} parent=1 // pred_region
      _
    $region41: #{tpu_custom_call.1} parent=1 // pred_fallthru
      _
    // Predicated region
    $region42: #{tpu_custom_call.1} parent=1 // pred_check
      _
    $region43: #{tpu_custom_call.1} parent=1 // pred_check_branch
      %39 = sbr.rel (0) target = $region45
    $region44: #{tpu_custom_call.1} parent=1 // pred_region
      _
    $region45: #{tpu_custom_call.1} parent=1 // pred_fallthru
      _
    // Predicated region
    $region46: #{tpu_custom_call.1} parent=1 // pred_check
      _
    $region47: #{tpu_custom_call.1} parent=1 // pred_check_branch
      %41 = sbr.rel (0) target = $region49
    $region48: #{tpu_custom_call.1} parent=1 // pred_region
      _
    $region49: #{tpu_custom_call.1} parent=1 // pred_fallthru
      _
    %v43 = vld [vmem:[%s0] sm:$0xff]
    %v44 = vld [vmem:[%s0 + $0x8] sm:$0xff]
    %vm45 = vcmask 261120
    %v46 = vsel %vm45, %v43, 0.0
    %47 = vadd.xlane.f32.xlu0 %v46
    %v48 = vpop.xlane.xlu0 %47
    %v49 = vsel %vm45, %v44, 0.0
    %50 = vadd.xlane.f32.xlu0 %v49
    %v51 = vpop.xlane.xlu0 %50
    %v52 = vrcp.pop 32.0
    %v53 = vmul.f32 32.0, %v52
    %v54 = vsub.f32 1.0, %v53
    %v55 = vmul.f32 %v52, %v54
    %v56 = vadd.f32 %v52, %v55
    %vm57 = vweird.f32 %v52
    %v58 = vsel %vm57, %v52, %v56
    %v59 = vmul.f32 %v48, %v58
    %v60 = vmul.f32 %v51, %v58
    %v61 = vsub.f32 %v43, %v59
    %v62 = vsub.f32 %v44, %v60
    %v63 = vmul.f32 %v61, %v61
    %v64 = vmul.f32 %v62, %v62
    %v65 = vsel %vm45, %v63, 0.0
    %66 = vadd.xlane.f32.xlu0 %v65
    %v67 = vpop.xlane.xlu0 %66
    %v68 = vsel %vm45, %v64, 0.0
    %69 = vadd.xlane.f32.xlu0 %v68
    %v70 = vpop.xlane.xlu0 %69
    %v71 = vmul.f32 %v67, %v58
    %v72 = vmul.f32 %v70, %v58
    %v73 = vadd.f32 %v71, 1e-05
    %v74 = vadd.f32 %v72, 1e-05
    %v75 = vrsqrt.pop %v73
    %v76 = vmul.f32 %v75, %v73
    %v77 = vmul.f32 %v76, %v75
    %v78 = vmul.f32 0.5, %v77
    %v79 = vsub.f32 1.5, %v78
    %v80 = vmul.f32 %v75, %v79
    %vm81 = vweird.f32 %v73
    %vm82 = vweird.f32 %v75
    %vm83 = vmor %vm81, %vm82
    %v84 = vsel %vm83, %v75, %v80
    %v85 = vrsqrt.pop %v74
    %v86 = vmul.f32 %v85, %v74
    %v87 = vmul.f32 %v86, %v85
    %v88 = vmul.f32 0.5, %v87
    %v89 = vsub.f32 1.5, %v88
    %v90 = vmul.f32 %v85, %v89
    %vm91 = vweird.f32 %v74
    %vm92 = vweird.f32 %v85
    %vm93 = vmor %vm91, %vm92
    %v94 = vsel %vm93, %v85, %v90
    %v95 = vmul.f32 %v61, %v84
    %v96 = vmul.f32 %v62, %v94
    %v97 = vld [vmem:[%s1] sm:$0x1]
    %v99 = vperm.slane %v97, 0
    %v101 = vmul.f32 %v95, %v99
    %v102 = vmul.f32 %v96, %v99
    %v103 = vld [vmem:[%s2] sm:$0x1]
    %v105 = vperm.slane %v103, 0
    %v107 = vadd.f32 %v101, %v105
    %v108 = vadd.f32 %v102, %v105
    %v109 = vpack.c.bf16 %v108, %v107
    %v110 = vld [vmem:[%s3] sm:$0xf]
    %v111 = vld [vmem:[%s3 + $0x4] sm:$0xf]
    %v112 = vld [vmem:[%s3 + $0x8] sm:$0xf]
    %v113 = vld [vmem:[%s3 + $0xc] sm:$0xf]
    %v118 = vunpack.c.l.b16 %v110
    %v119 = vunpack.c.l.b16 %v111
    %v120 = vunpack.c.l.b16 %v112
    %v121 = vunpack.c.l.b16 %v113
    %v122 = vpack.c.b16 %v119, %v118
    %v123 = vpack.c.b16 %v121, %v120
    %v127 = vsel %vm45, %v109, 0
    %129 = vmatpush.bf16.msra.mxu0 0
    %130 = vmatpush.bf16.msra.mxu0 0
    %131 = vmatpush.bf16.msra.mxu0 0
    %132 = vmatpush.bf16.msra.mxu0 0
    %133 = vmatpush.bf16.msra.mxu0 0
    %134 = vmatpush.bf16.msra.mxu0 0
    %135 = vmatpush.bf16.msra.mxu0 %v123
    %136 = vmatpush.bf16.msra.mxu0 %v122
    %137 = vmatmul.bf16.gmra.mxu0 %v127
    %v138 = vpop.f32.mrf.mxu0
    %v139 = vadd.f32 0.0, %v138
    %v140 = vpop.f32.mrf.mxu0
    %v141 = vadd.f32 0.0, %v140
    %142 = vdwg.mxu0
    %v143 = vmul.f32 %v139, 0.17677669
    %v144 = vmul.f32 %v141, 0.17677669
    %v145 = vpack.c.bf16 %v143, %v143
    %v146 = vpack.c.bf16 %v144, %v144
    %v147 = vpack.c.bf16 %v139, %v139
    %v148 = vpack.c.bf16 %v141, %v141
    %v149 = vlaneseq
    %v150 = vshrl.u32 %v149, 7
    %v151 = vlaneseq
    %v152 = vand.u32 %v151, 127
    %vm153 = vcmp.le.s32.totalorder %v152, %v150
    %v154 = vsel %vm153, 0.0, -1e+30
    %v156 = vunpack.c.l.b16 %v147
    %v157 = vpack.c.b16 %v156, %v156
    %158 = vrot.lane.b32.xlu0 %v157, 96
    %v159 = vpop.permute.xlu0 %158
    %vm160 = vcmask 64512
    %v162 = vsel %vm160, %v145, 0
    %v165 = vsel %vm160, %v159, 0
    %167 = vmatpush.bf16.xpose.msra.mxu0 0
    %168 = vmatpush.bf16.xpose.msra.mxu0 0
    %169 = vmatpush.bf16.xpose.msra.mxu0 0
    %170 = vmatpush.bf16.xpose.msra.mxu0 0
    %171 = vmatpush.bf16.xpose.msra.mxu0 0
    %172 = vmatpush.bf16.xpose.msra.mxu0 0
    %173 = vmatpush.bf16.xpose.msra.mxu0 0
    %174 = vmatpush.bf16.xpose.msra.mxu0 %v165
    %175 = vmatmul.bf16.gmra.mxu0 %v162
    %v176 = vpop.f32.mrf.mxu0
    %v177 = vadd.f32 %v154, %v176
    %v178 = vpop.f32.mrf.mxu0
    %179 = vdwg.mxu0
    %v181 = vunpack.c.l.b16 %v148
    %v182 = vpack.c.b16 %v181, %v181
    %183 = vrot.lane.b32.xlu0 %v182, 96
    %v184 = vpop.permute.xlu0 %183
    %v186 = vsel %vm160, %v146, 0
    %v189 = vsel %vm160, %v184, 0
    %191 = vmatpush.bf16.xpose.msra.mxu0 0
    %192 = vmatpush.bf16.xpose.msra.mxu0 0
    %193 = vmatpush.bf16.xpose.msra.mxu0 0
    %194 = vmatpush.bf16.xpose.msra.mxu0 0
    %195 = vmatpush.bf16.xpose.msra.mxu0 0
    %196 = vmatpush.bf16.xpose.msra.mxu0 0
    %197 = vmatpush.bf16.xpose.msra.mxu0 0
    %198 = vmatpush.bf16.xpose.msra.mxu0 %v189
    %199 = vmatmul.bf16.gmra.mxu0 %v186
    %v200 = vpop.f32.mrf.mxu0
    %v201 = vadd.f32 %v154, %v200
    %v202 = vpop.f32.mrf.mxu0
    %203 = vdwg.mxu0
    %v204 = vsel %vm160, %v177, -inf
    %205 = vmax.xlane.f32.xlu0 %v204
    %v206 = vpop.xlane.xlu0 %205
    %v207 = vsel %vm160, %v201, -inf
    %208 = vmax.xlane.f32.xlu0 %v207
    %v209 = vpop.xlane.xlu0 %208
    %v210 = vsub.f32 %v177, %v206
    %v211 = vsub.f32 %v201, %v209
    %v212 = vmul.f32 %v210, 1.442695
    %v213 = vpow.pop %v212
    %v214 = vmul.f32 %v211, 1.442695
    %v215 = vpow.pop %v214
    %v216 = vsel %vm160, %v213, 0.0
    %217 = vadd.xlane.f32.xlu0 %v216
    %v218 = vpop.xlane.xlu0 %217
    %v219 = vsel %vm160, %v215, 0.0
    %220 = vadd.xlane.f32.xlu0 %v219
    %v221 = vpop.xlane.xlu0 %220
    %v222 = vrcp.pop %v218
    %v223 = vrcp.pop %v221
    %v224 = vmul.f32 %v213, %v222
    %v225 = vmul.f32 %v215, %v223
    %v226 = vpack.c.bf16 %v224, %v224
    %v227 = vpack.c.bf16 %v225, %v225
    %228 = vrot.lane.b32.xlu0 %v157, 64
    %v229 = vpop.permute.xlu0 %228
    %v231 = vsel %vm160, %v226, 0
    %vm233 = vcmask 1043456
    %v235 = vsel %vm233, %v229, 0
    %237 = vmatpush.bf16.msra.mxu0 0
    %238 = vmatpush.bf16.msra.mxu0 0
    %239 = vmatpush.bf16.msra.mxu0 0
    %240 = vmatpush.bf16.msra.mxu0 0
    %241 = vmatpush.bf16.msra.mxu0 0
    %242 = vmatpush.bf16.msra.mxu0 0
    %243 = vmatpush.bf16.msra.mxu0 0
    %244 = vmatpush.bf16.msra.mxu0 %v235
    %245 = vmatmul.bf16.gmra.mxu0 %v231
    %v246 = vpop.f32.mrf.mxu0
    %v247 = vadd.f32 0.0, %v246
    %v248 = vpop.f32.mrf.mxu0
    %249 = vdwg.mxu0
    %250 = vrot.lane.b32.xlu0 %v182, 64
    %v251 = vpop.permute.xlu0 %250
    %v253 = vsel %vm160, %v227, 0
    %v256 = vsel %vm233, %v251, 0
    %258 = vmatpush.bf16.msra.mxu0 0
    %259 = vmatpush.bf16.msra.mxu0 0
    %260 = vmatpush.bf16.msra.mxu0 0
    %261 = vmatpush.bf16.msra.mxu0 0
    %262 = vmatpush.bf16.msra.mxu0 0
    %263 = vmatpush.bf16.msra.mxu0 0
    %264 = vmatpush.bf16.msra.mxu0 0
    %265 = vmatpush.bf16.msra.mxu0 %v256
    %266 = vmatmul.bf16.gmra.mxu0 %v253
    %v267 = vpop.f32.mrf.mxu0
    %v268 = vadd.f32 0.0, %v267
    %v269 = vpop.f32.mrf.mxu0
    %270 = vdwg.mxu0
    %v272 = vunpack.c.l.b16 %v145
    %v273 = vpack.c.b16 %v272, %v272
    %274 = vrot.lane.b32.xlu0 %v273, 120
    %v275 = vpop.permute.xlu0 %274
    %276 = vrot.lane.b32.xlu0 %v157, 88
    %v277 = vpop.permute.xlu0 %276
    %v279 = vsel %vm160, %v275, 0
    %v282 = vsel %vm160, %v277, 0
    %284 = vmatpush.bf16.xpose.msra.mxu0 0
    %285 = vmatpush.bf16.xpose.msra.mxu0 0
    %286 = vmatpush.bf16.xpose.msra.mxu0 0
    %287 = vmatpush.bf16.xpose.msra.mxu0 0
    %288 = vmatpush.bf16.xpose.msra.mxu0 0
    %289 = vmatpush.bf16.xpose.msra.mxu0 0
    %290 = vmatpush.bf16.xpose.msra.mxu0 0
    %291 = vmatpush.bf16.xpose.msra.mxu0 %v282
    %292 = vmatmul.bf16.gmra.mxu0 %v279
    %v293 = vpop.f32.mrf.mxu0
    %v294 = vadd.f32 %v154, %v293
    %v295 = vpop.f32.mrf.mxu0
    %296 = vdwg.mxu0
    %v298 = vunpack.c.l.b16 %v146
    %v299 = vpack.c.b16 %v298, %v298
    %300 = vrot.lane.b32.xlu0 %v299, 120
    %v301 = vpop.permute.xlu0 %300
    %302 = vrot.lane.b32.xlu0 %v182, 88
    %v303 = vpop.permute.xlu0 %302
    %v305 = vsel %vm160, %v301, 0
    %v308 = vsel %vm160, %v303, 0
    %310 = vmatpush.bf16.xpose.msra.mxu0 0
    %311 = vmatpush.bf16.xpose.msra.mxu0 0
    %312 = vmatpush.bf16.xpose.msra.mxu0 0
    %313 = vmatpush.bf16.xpose.msra.mxu0 0
    %314 = vmatpush.bf16.xpose.msra.mxu0 0
    %315 = vmatpush.bf16.xpose.msra.mxu0 0
    %316 = vmatpush.bf16.xpose.msra.mxu0 0
    %317 = vmatpush.bf16.xpose.msra.mxu0 %v308
    %318 = vmatmul.bf16.gmra.mxu0 %v305
    %v319 = vpop.f32.mrf.mxu0
    %v320 = vadd.f32 %v154, %v319
    %v321 = vpop.f32.mrf.mxu0
    %322 = vdwg.mxu0
    %v323 = vsel %vm160, %v294, -inf
    %324 = vmax.xlane.f32.xlu0 %v323
    %v325 = vpop.xlane.xlu0 %324
    %v326 = vsel %vm160, %v320, -inf
    %327 = vmax.xlane.f32.xlu0 %v326
    %v328 = vpop.xlane.xlu0 %327
    %v329 = vsub.f32 %v294, %v325
    %v330 = vsub.f32 %v320, %v328
    %v331 = vmul.f32 %v329, 1.442695
    %v332 = vpow.pop %v331
    %v333 = vmul.f32 %v330, 1.442695
    %v334 = vpow.pop %v333
    %v335 = vsel %vm160, %v332, 0.0
    %336 = vadd.xlane.f32.xlu0 %v335
    %v337 = vpop.xlane.xlu0 %336
    %v338 = vsel %vm160, %v334, 0.0
    %339 = vadd.xlane.f32.xlu0 %v338
    %v340 = vpop.xlane.xlu0 %339
    %v341 = vrcp.pop %v337
    %v342 = vrcp.pop %v340
    %v343 = vmul.f32 %v332, %v341
    %v344 = vmul.f32 %v334, %v342
    %v345 = vpack.c.bf16 %v343, %v343
    %v346 = vpack.c.bf16 %v344, %v344
    %347 = vrot.lane.b32.xlu0 %v157, 56
    %v348 = vpop.permute.xlu0 %347
    %v350 = vsel %vm160, %v345, 0
    %v353 = vsel %vm233, %v348, 0
    %355 = vmatpush.bf16.msra.mxu0 0
    %356 = vmatpush.bf16.msra.mxu0 0
    %357 = vmatpush.bf16.msra.mxu0 0
    %358 = vmatpush.bf16.msra.mxu0 0
    %359 = vmatpush.bf16.msra.mxu0 0
    %360 = vmatpush.bf16.msra.mxu0 0
    %361 = vmatpush.bf16.msra.mxu0 0
    %362 = vmatpush.bf16.msra.mxu0 %v353
    %363 = vmatmul.bf16.gmra.mxu0 %v350
    %v364 = vpop.f32.mrf.mxu0
    %v365 = vadd.f32 0.0, %v364
    %v366 = vpop.f32.mrf.mxu0
    %367 = vdwg.mxu0
    %368 = vrot.lane.b32.xlu0 %v182, 56
    %v369 = vpop.permute.xlu0 %368
    %v371 = vsel %vm160, %v346, 0
    %v374 = vsel %vm233, %v369, 0
    %376 = vmatpush.bf16.msra.mxu0 0
    %377 = vmatpush.bf16.msra.mxu0 0
    %378 = vmatpush.bf16.msra.mxu0 0
    %379 = vmatpush.bf16.msra.mxu0 0
    %380 = vmatpush.bf16.msra.mxu0 0
    %381 = vmatpush.bf16.msra.mxu0 0
    %382 = vmatpush.bf16.msra.mxu0 0
    %383 = vmatpush.bf16.msra.mxu0 %v374
    %384 = vmatmul.bf16.gmra.mxu0 %v371
    %v385 = vpop.f32.mrf.mxu0
    %v386 = vadd.f32 0.0, %v385
    %v387 = vpop.f32.mrf.mxu0
    %388 = vdwg.mxu0
    %389 = vrot.lane.b32.xlu0 %v273, 112
    %v390 = vpop.permute.xlu0 %389
    %391 = vrot.lane.b32.xlu0 %v157, 80
    %v392 = vpop.permute.xlu0 %391
    %v394 = vsel %vm160, %v390, 0
    %v397 = vsel %vm160, %v392, 0
    %399 = vmatpush.bf16.xpose.msra.mxu0 0
    %400 = vmatpush.bf16.xpose.msra.mxu0 0
    %401 = vmatpush.bf16.xpose.msra.mxu0 0
    %402 = vmatpush.bf16.xpose.msra.mxu0 0
    %403 = vmatpush.bf16.xpose.msra.mxu0 0
    %404 = vmatpush.bf16.xpose.msra.mxu0 0
    %405 = vmatpush.bf16.xpose.msra.mxu0 0
    %406 = vmatpush.bf16.xpose.msra.mxu0 %v397
    %407 = vmatmul.bf16.gmra.mxu0 %v394
    %v408 = vpop.f32.mrf.mxu0
    %v409 = vadd.f32 %v154, %v408
    %v410 = vpop.f32.mrf.mxu0
    %411 = vdwg.mxu0
    %412 = vrot.lane.b32.xlu0 %v299, 112
    %v413 = vpop.permute.xlu0 %412
    %414 = vrot.lane.b32.xlu0 %v182, 80
    %v415 = vpop.permute.xlu0 %414
    %v417 = vsel %vm160, %v413, 0
    %v420 = vsel %vm160, %v415, 0
    %422 = vmatpush.bf16.xpose.msra.mxu0 0
    %423 = vmatpush.bf16.xpose.msra.mxu0 0
    %424 = vmatpush.bf16.xpose.msra.mxu0 0
    %425 = vmatpush.bf16.xpose.msra.mxu0 0
    %426 = vmatpush.bf16.xpose.msra.mxu0 0
    %427 = vmatpush.bf16.xpose.msra.mxu0 0
    %428 = vmatpush.bf16.xpose.msra.mxu0 0
    %429 = vmatpush.bf16.xpose.msra.mxu0 %v420
    %430 = vmatmul.bf16.gmra.mxu0 %v417
    %v431 = vpop.f32.mrf.mxu0
    %v432 = vadd.f32 %v154, %v431
    %v433 = vpop.f32.mrf.mxu0
    %434 = vdwg.mxu0
    %v435 = vsel %vm160, %v409, -inf
    %436 = vmax.xlane.f32.xlu0 %v435
    %v437 = vpop.xlane.xlu0 %436
    %v438 = vsel %vm160, %v432, -inf
    %439 = vmax.xlane.f32.xlu0 %v438
    %v440 = vpop.xlane.xlu0 %439
    %v441 = vsub.f32 %v409, %v437
    %v442 = vsub.f32 %v432, %v440
    %v443 = vmul.f32 %v441, 1.442695
    %v444 = vpow.pop %v443
    %v445 = vmul.f32 %v442, 1.442695
    %v446 = vpow.pop %v445
    %v447 = vsel %vm160, %v444, 0.0
    %448 = vadd.xlane.f32.xlu0 %v447
    %v449 = vpop.xlane.xlu0 %448
    %v450 = vsel %vm160, %v446, 0.0
    %451 = vadd.xlane.f32.xlu0 %v450
    %v452 = vpop.xlane.xlu0 %451
    %v453 = vrcp.pop %v449
    %v454 = vrcp.pop %v452
    %v455 = vmul.f32 %v444, %v453
    %v456 = vmul.f32 %v446, %v454
    %v457 = vpack.c.bf16 %v455, %v455
    %v458 = vpack.c.bf16 %v456, %v456
    %459 = vrot.lane.b32.xlu0 %v157, 48
    %v460 = vpop.permute.xlu0 %459
    %v462 = vsel %vm160, %v457, 0
    %v465 = vsel %vm233, %v460, 0
    %467 = vmatpush.bf16.msra.mxu0 0
    %468 = vmatpush.bf16.msra.mxu0 0
    %469 = vmatpush.bf16.msra.mxu0 0
    %470 = vmatpush.bf16.msra.mxu0 0
    %471 = vmatpush.bf16.msra.mxu0 0
    %472 = vmatpush.bf16.msra.mxu0 0
    %473 = vmatpush.bf16.msra.mxu0 0
    %474 = vmatpush.bf16.msra.mxu0 %v465
    %475 = vmatmul.bf16.gmra.mxu0 %v462
    %v476 = vpop.f32.mrf.mxu0
    %v477 = vadd.f32 0.0, %v476
    %v478 = vpop.f32.mrf.mxu0
    %479 = vdwg.mxu0
    %480 = vrot.lane.b32.xlu0 %v182, 48
    %v481 = vpop.permute.xlu0 %480
    %v483 = vsel %vm160, %v458, 0
    %v486 = vsel %vm233, %v481, 0
    %488 = vmatpush.bf16.msra.mxu0 0
    %489 = vmatpush.bf16.msra.mxu0 0
    %490 = vmatpush.bf16.msra.mxu0 0
    %491 = vmatpush.bf16.msra.mxu0 0
    %492 = vmatpush.bf16.msra.mxu0 0
    %493 = vmatpush.bf16.msra.mxu0 0
    %494 = vmatpush.bf16.msra.mxu0 0
    %495 = vmatpush.bf16.msra.mxu0 %v486
    %496 = vmatmul.bf16.gmra.mxu0 %v483
    %v497 = vpop.f32.mrf.mxu0
    %v498 = vadd.f32 0.0, %v497
    %v499 = vpop.f32.mrf.mxu0
    %500 = vdwg.mxu0
    %501 = vrot.lane.b32.xlu0 %v273, 104
    %v502 = vpop.permute.xlu0 %501
    %503 = vrot.lane.b32.xlu0 %v157, 72
    %v504 = vpop.permute.xlu0 %503
    %v506 = vsel %vm160, %v502, 0
    %v509 = vsel %vm160, %v504, 0
    %511 = vmatpush.bf16.xpose.msra.mxu0 0
    %512 = vmatpush.bf16.xpose.msra.mxu0 0
    %513 = vmatpush.bf16.xpose.msra.mxu0 0
    %514 = vmatpush.bf16.xpose.msra.mxu0 0
    %515 = vmatpush.bf16.xpose.msra.mxu0 0
    %516 = vmatpush.bf16.xpose.msra.mxu0 0
    %517 = vmatpush.bf16.xpose.msra.mxu0 0
    %518 = vmatpush.bf16.xpose.msra.mxu0 %v509
    %519 = vmatmul.bf16.gmra.mxu0 %v506
    %v520 = vpop.f32.mrf.mxu0
    %v521 = vadd.f32 %v154, %v520
    %v522 = vpop.f32.mrf.mxu0
    %523 = vdwg.mxu0
    %524 = vrot.lane.b32.xlu0 %v299, 104
    %v525 = vpop.permute.xlu0 %524
    %526 = vrot.lane.b32.xlu0 %v182, 72
    %v527 = vpop.permute.xlu0 %526
    %v529 = vsel %vm160, %v525, 0
    %v532 = vsel %vm160, %v527, 0
    %534 = vmatpush.bf16.xpose.msra.mxu0 0
    %535 = vmatpush.bf16.xpose.msra.mxu0 0
    %536 = vmatpush.bf16.xpose.msra.mxu0 0
    %537 = vmatpush.bf16.xpose.msra.mxu0 0
    %538 = vmatpush.bf16.xpose.msra.mxu0 0
    %539 = vmatpush.bf16.xpose.msra.mxu0 0
    %540 = vmatpush.bf16.xpose.msra.mxu0 0
    %541 = vmatpush.bf16.xpose.msra.mxu0 %v532
    %542 = vmatmul.bf16.gmra.mxu0 %v529
    %v543 = vpop.f32.mrf.mxu0
    %v544 = vadd.f32 %v154, %v543
    %v545 = vpop.f32.mrf.mxu0
    %546 = vdwg.mxu0
    %v547 = vsel %vm160, %v521, -inf
    %548 = vmax.xlane.f32.xlu0 %v547
    %v549 = vpop.xlane.xlu0 %548
    %v550 = vsel %vm160, %v544, -inf
    %551 = vmax.xlane.f32.xlu0 %v550
    %v552 = vpop.xlane.xlu0 %551
    %v553 = vsub.f32 %v521, %v549
    %v554 = vsub.f32 %v544, %v552
    %v555 = vmul.f32 %v553, 1.442695
    %v556 = vpow.pop %v555
    %v557 = vmul.f32 %v554, 1.442695
    %v558 = vpow.pop %v557
    %v559 = vsel %vm160, %v556, 0.0
    %560 = vadd.xlane.f32.xlu0 %v559
    %v561 = vpop.xlane.xlu0 %560
    %v562 = vsel %vm160, %v558, 0.0
    %563 = vadd.xlane.f32.xlu0 %v562
    %v564 = vpop.xlane.xlu0 %563
    %v565 = vrcp.pop %v561
    %v566 = vrcp.pop %v564
    %v567 = vmul.f32 %v556, %v565
    %v568 = vmul.f32 %v558, %v566
    %v569 = vpack.c.bf16 %v567, %v567
    %v570 = vpack.c.bf16 %v568, %v568
    %571 = vrot.lane.b32.xlu0 %v157, 40
    %v572 = vpop.permute.xlu0 %571
    %v574 = vsel %vm160, %v569, 0
    %v577 = vsel %vm233, %v572, 0
    %579 = vmatpush.bf16.msra.mxu0 0
    %580 = vmatpush.bf16.msra.mxu0 0
    %581 = vmatpush.bf16.msra.mxu0 0
    %582 = vmatpush.bf16.msra.mxu0 0
    %583 = vmatpush.bf16.msra.mxu0 0
    %584 = vmatpush.bf16.msra.mxu0 0
    %585 = vmatpush.bf16.msra.mxu0 0
    %586 = vmatpush.bf16.msra.mxu0 %v577
    %587 = vmatmul.bf16.gmra.mxu0 %v574
    %v588 = vpop.f32.mrf.mxu0
    %v589 = vadd.f32 0.0, %v588
    %v590 = vpop.f32.mrf.mxu0
    %591 = vdwg.mxu0
    %592 = vrot.lane.b32.xlu0 %v182, 40
    %v593 = vpop.permute.xlu0 %592
    %v595 = vsel %vm160, %v570, 0
    %v598 = vsel %vm233, %v593, 0
    %600 = vmatpush.bf16.msra.mxu0 0
    %601 = vmatpush.bf16.msra.mxu0 0
    %602 = vmatpush.bf16.msra.mxu0 0
    %603 = vmatpush.bf16.msra.mxu0 0
    %604 = vmatpush.bf16.msra.mxu0 0
    %605 = vmatpush.bf16.msra.mxu0 0
    %606 = vmatpush.bf16.msra.mxu0 0
    %607 = vmatpush.bf16.msra.mxu0 %v598
    %608 = vmatmul.bf16.gmra.mxu0 %v595
    %v609 = vpop.f32.mrf.mxu0
    %v610 = vadd.f32 0.0, %v609
    %v611 = vpop.f32.mrf.mxu0
    %612 = vdwg.mxu0
    %615 = vrot.lane.b32.xlu0 %v365, 8
    %v616 = vpop.permute.xlu0 %615
    %617 = vrot.lane.b32.xlu0 %v386, 8
    %v618 = vpop.permute.xlu0 %617
    %623 = vrot.lane.b32.xlu0 %v477, 16
    %v624 = vpop.permute.xlu0 %623
    %625 = vrot.lane.b32.xlu0 %v498, 16
    %v626 = vpop.permute.xlu0 %625
    %631 = vrot.lane.b32.xlu0 %v589, 24
    %v632 = vpop.permute.xlu0 %631
    %633 = vrot.lane.b32.xlu0 %v610, 24
    %v634 = vpop.permute.xlu0 %633
    %v637 = vsel %vm160, %v247, %v616
    %v638 = vsel %vm160, %v268, %v618
    %vm639 = vcmask 130048
    %v640 = vsel %vm639, %v637, %v624
    %v641 = vsel %vm639, %v638, %v626
    %vm642 = vcmask 195584
    %v643 = vsel %vm642, %v640, %v632
    %v644 = vsel %vm642, %v641, %v634
    %v645 = vpack.c.bf16 %v644, %v643
    %v646 = vld [vmem:[%s4] sm:$0xf]
    %v647 = vld [vmem:[%s4 + $0x4] sm:$0xf]
    %v648 = vld [vmem:[%s4 + $0x8] sm:$0xf]
    %v649 = vld [vmem:[%s4 + $0xc] sm:$0xf]
    %v650 = vld [vmem:[%s5] sm:$0x1]
    %v652 = vperm.slane %v650, 0
    %v658 = vunpack.c.l.b16 %v646
    %v659 = vunpack.c.l.b16 %v647
    %v660 = vunpack.c.l.b16 %v648
    %v661 = vunpack.c.l.b16 %v649
    %v662 = vpack.c.b16 %v659, %v658
    %v663 = vpack.c.b16 %v661, %v660
    %v667 = vsel %vm45, %v645, 0
    %669 = vmatpush.bf16.msra.mxu0 0
    %670 = vmatpush.bf16.msra.mxu0 0
    %671 = vmatpush.bf16.msra.mxu0 0
    %672 = vmatpush.bf16.msra.mxu0 0
    %673 = vmatpush.bf16.msra.mxu0 0
    %674 = vmatpush.bf16.msra.mxu0 0
    %675 = vmatpush.bf16.msra.mxu0 %v663
    %676 = vmatpush.bf16.msra.mxu0 %v662
    %677 = vmatmul.bf16.gmra.mxu0 %v667
    %v678 = vpop.f32.mrf.mxu0
    %v679 = vadd.f32 %v652, %v678
    %v680 = vpop.f32.mrf.mxu0
    %v681 = vadd.f32 %v652, %v680
    %682 = vdwg.mxu0
    %v683 = vadd.f32 %v43, %v679
    %v684 = vadd.f32 %v44, %v681
    %v685 = vsel %vm45, %v683, 0.0
    %686 = vadd.xlane.f32.xlu0 %v685
    %v687 = vpop.xlane.xlu0 %686
    %v688 = vsel %vm45, %v684, 0.0
    %689 = vadd.xlane.f32.xlu0 %v688
    %v690 = vpop.xlane.xlu0 %689
    %v691 = vmul.f32 %v687, %v58
    %v692 = vmul.f32 %v690, %v58
    %v693 = vsub.f32 %v683, %v691
    %v694 = vsub.f32 %v684, %v692
    %v695 = vmul.f32 %v693, %v693
    %v696 = vmul.f32 %v694, %v694
    %v697 = vsel %vm45, %v695, 0.0
    %698 = vadd.xlane.f32.xlu0 %v697
    %v699 = vpop.xlane.xlu0 %698
    %v700 = vsel %vm45, %v696, 0.0
    %701 = vadd.xlane.f32.xlu0 %v700
    %v702 = vpop.xlane.xlu0 %701
    %v703 = vmul.f32 %v699, %v58
    %v704 = vmul.f32 %v702, %v58
    %v705 = vadd.f32 %v703, 1e-05
    %v706 = vadd.f32 %v704, 1e-05
    %v707 = vrsqrt.pop %v705
    %v708 = vmul.f32 %v707, %v705
    %v709 = vmul.f32 %v708, %v707
    %v710 = vmul.f32 0.5, %v709
    %v711 = vsub.f32 1.5, %v710
    %v712 = vmul.f32 %v707, %v711
    %vm713 = vweird.f32 %v705
    %vm714 = vweird.f32 %v707
    %vm715 = vmor %vm713, %vm714
    %v716 = vsel %vm715, %v707, %v712
    %v717 = vrsqrt.pop %v706
    %v718 = vmul.f32 %v717, %v706
    %v719 = vmul.f32 %v718, %v717
    %v720 = vmul.f32 0.5, %v719
    %v721 = vsub.f32 1.5, %v720
    %v722 = vmul.f32 %v717, %v721
    %vm723 = vweird.f32 %v706
    %vm724 = vweird.f32 %v717
    %vm725 = vmor %vm723, %vm724
    %v726 = vsel %vm725, %v717, %v722
    %v727 = vmul.f32 %v693, %v716
    %v728 = vmul.f32 %v694, %v726
    %v729 = vld [vmem:[%s6] sm:$0x1]
    %v731 = vperm.slane %v729, 0
    %v733 = vmul.f32 %v727, %v731
    %v734 = vmul.f32 %v728, %v731
    %v735 = vld [vmem:[%s7] sm:$0x1]
    %v737 = vperm.slane %v735, 0
    %v739 = vadd.f32 %v733, %v737
    %v740 = vadd.f32 %v734, %v737
    %v741 = vpack.c.bf16 %v740, %v739
    %v742 = vld [vmem:[%s8] sm:$0xf]
    %v743 = vld [vmem:[%s8 + $0x4] sm:$0xf]
    %v744 = vld [vmem:[%s8 + $0x8] sm:$0xf]
    %v745 = vld [vmem:[%s8 + $0xc] sm:$0xf]
    %v746 = vld [vmem:[%s9] sm:$0x1]
    %v748 = vperm.slane %v746, 0
    %v754 = vunpack.c.l.b16 %v742
    %v755 = vunpack.c.l.b16 %v743
    %v756 = vunpack.c.l.b16 %v744
    %v757 = vunpack.c.l.b16 %v745
    %v758 = vpack.c.b16 %v755, %v754
    %v759 = vpack.c.b16 %v757, %v756
    %v763 = vsel %vm45, %v741, 0
    %765 = vmatpush.bf16.msra.mxu0 0
    %766 = vmatpush.bf16.msra.mxu0 0
    %767 = vmatpush.bf16.msra.mxu0 0
    %768 = vmatpush.bf16.msra.mxu0 0
    %769 = vmatpush.bf16.msra.mxu0 0
    %770 = vmatpush.bf16.msra.mxu0 0
    %771 = vmatpush.bf16.msra.mxu0 %v759
    %772 = vmatpush.bf16.msra.mxu0 %v758
    %773 = vmatmul.bf16.gmra.mxu0 %v763
    %v774 = vpop.f32.mrf.mxu0
    %v775 = vadd.f32 %v748, %v774
    %v776 = vpop.f32.mrf.mxu0
    %v777 = vadd.f32 %v748, %v776
    %778 = vdwg.mxu0
    %v779 = vmax.f32 %v775, 0.0
    %v780 = vmax.f32 %v777, 0.0
    %v781 = vpack.c.bf16 %v780, %v779
    %v782 = vld [vmem:[%s10] sm:$0xf]
    %v783 = vld [vmem:[%s10 + $0x4] sm:$0xf]
    %v784 = vld [vmem:[%s10 + $0x8] sm:$0xf]
    %v785 = vld [vmem:[%s10 + $0xc] sm:$0xf]
    %v786 = vld [vmem:[%s10 + $0x10] sm:$0xf]
    %v787 = vld [vmem:[%s10 + $0x14] sm:$0xf]
    %v788 = vld [vmem:[%s10 + $0x18] sm:$0xf]
    %v789 = vld [vmem:[%s10 + $0x1c] sm:$0xf]
    %v790 = vld [vmem:[%s10 + $0x20] sm:$0xf]
    %v791 = vld [vmem:[%s10 + $0x24] sm:$0xf]
    %v792 = vld [vmem:[%s10 + $0x28] sm:$0xf]
    %v793 = vld [vmem:[%s10 + $0x2c] sm:$0xf]
    %v794 = vld [vmem:[%s10 + $0x30] sm:$0xf]
    %v795 = vld [vmem:[%s10 + $0x34] sm:$0xf]
    %v796 = vld [vmem:[%s10 + $0x38] sm:$0xf]
    %v797 = vld [vmem:[%s10 + $0x3c] sm:$0xf]
    %v798 = vld [vmem:[%s11] sm:$0x1]
    %v800 = vperm.slane %v798, 0
    %v818 = vunpack.c.l.b16 %v782
    %v819 = vunpack.c.l.b16 %v783
    %v820 = vunpack.c.l.b16 %v784
    %v821 = vunpack.c.l.b16 %v785
    %v822 = vunpack.c.l.b16 %v786
    %v823 = vunpack.c.l.b16 %v787
    %v824 = vunpack.c.l.b16 %v788
    %v825 = vunpack.c.l.b16 %v789
    %v826 = vunpack.c.l.b16 %v790
    %v827 = vunpack.c.l.b16 %v791
    %v828 = vunpack.c.l.b16 %v792
    %v829 = vunpack.c.l.b16 %v793
    %v830 = vunpack.c.l.b16 %v794
    %v831 = vunpack.c.l.b16 %v795
    %v832 = vunpack.c.l.b16 %v796
    %v833 = vunpack.c.l.b16 %v797
    %v834 = vpack.c.b16 %v819, %v818
    %v835 = vpack.c.b16 %v821, %v820
    %v836 = vpack.c.b16 %v823, %v822
    %v837 = vpack.c.b16 %v825, %v824
    %v838 = vpack.c.b16 %v827, %v826
    %v839 = vpack.c.b16 %v829, %v828
    %v840 = vpack.c.b16 %v831, %v830
    %v841 = vpack.c.b16 %v833, %v832
    %850 = vmatpush.bf16.msra.mxu0 %v841
    %851 = vmatpush.bf16.msra.mxu0 %v840
    %852 = vmatpush.bf16.msra.mxu0 %v839
    %853 = vmatpush.bf16.msra.mxu0 %v838
    %854 = vmatpush.bf16.msra.mxu0 %v837
    %855 = vmatpush.bf16.msra.mxu0 %v836
    %856 = vmatpush.bf16.msra.mxu0 %v835
    %857 = vmatpush.bf16.msra.mxu0 %v834
    %858 = vmatmul.bf16.gmra.mxu0 %v781
    %v859 = vpop.f32.mrf.mxu0
    %v860 = vadd.f32 %v800, %v859
    %v861 = vpop.f32.mrf.mxu0
    %v862 = vadd.f32 %v800, %v861
    %863 = vdwg.mxu0
    %v864 = vadd.f32 %v683, %v860
    %v865 = vadd.f32 %v684, %v862
    %866 = vst.msk [vmem:[#allocation2] sm:$0xff] %vm45, %v864
    %867 = vst.msk [vmem:[#allocation2 + $0x8] sm:$0xff] %vm45, %v865
    // Predicated region
    $region50: #{tpu_custom_call.1} parent=1 // pred_check
      _
    $region51: #{tpu_custom_call.1} parent=1 // pred_check_branch
      %869 = sbr.rel (0) target = $region53
    $region52: #{tpu_custom_call.1} parent=1 // pred_region
      %871 = vsyncadd [#allocation3], 0
      %s872 = sshll.u32 [#allocation2], 4
      %s873 = int_to_ptr.vmem [resolvable:$true] %s872
      %s874 = sshll.u32 %s12, 4
      %s875 = int_to_ptr.hbm [resolvable:$true] %s874
      %880 = dma.vmem_to_hbm [thread:$0]  %s873, 256, %s875, [#allocation3], 128, 128, 8
    $region53: #{tpu_custom_call.1} parent=1 // pred_fallthru
      _
    // Predicated region
    $region54: #{tpu_custom_call.1} parent=1 // pred_check
      _
    $region55: #{tpu_custom_call.1} parent=1 // pred_check_branch
      %882 = sbr.rel (0) target = $region57
    $region56: #{tpu_custom_call.1} parent=1 // pred_region
      %884 = dma.done [#allocation3], 256
    $region57: #{tpu_custom_call.1} parent=1 // pred_fallthru
      _
    %885 = vsyncpa [#allocation3], 1

</llo_original>
